<compile_context>
chip_gen: v7x
topology: tpu7x:2x2x1
jax: 0.10.0
libtpu: 0.0.40
codegen_flags: <defaults>
</compile_context>

<pallas_src>
import functools

import jax
import jax.numpy as jnp
from jax.experimental import pallas as pl
from jax.experimental.pallas import tpu as pltpu


def _round_up(n, m):
    return ((n + m - 1) // m) * m


def _dueling_fwd_kernel(x_ref,
                        w1_ref, b1_ref, w2_ref, b2_ref,
                        wh_ref, bh_ref, wo_ref, bo_ref,
                        qa_ref, asum_ref,
                        *, batch, tile_b, output_dim):
    """Per batch tile: qa[:, j] = V + A_j; also its masked partial adv-sum."""
    i = pl.program_id(0)

    x = x_ref[...]  # bf16 or f32 (set by the wrapper)

    # features: Linear(input_dim, 32) -> ReLU -> Linear(32, 32) -> ReLU
    h = jnp.dot(x, w1_ref[...], preferred_element_type=jnp.float32) + b1_ref[...]
    h = jnp.maximum(h, 0.0)
    h = jnp.dot(h.astype(w2_ref.dtype), w2_ref[...],
                preferred_element_type=jnp.float32) + b2_ref[...]
    h = jnp.maximum(h, 0.0)

    # fused value/advantage hidden layers: one matmul, columns = [vh | ah]
    y = jnp.dot(h.astype(wh_ref.dtype), wh_ref[...],
                preferred_element_type=jnp.float32) + bh_ref[...]
    y = jnp.maximum(y, 0.0)

    # fused output layer, V folded into every advantage column:
    #   va[:, j]  = V + A_j   for j < output_dim
    #   va[:, -1] = V         (bookkeeping column for the advantage sum)
    va = jnp.dot(y.astype(wo_ref.dtype), wo_ref[...],
                 preferred_element_type=jnp.float32) + bo_ref[...]

    qa_ref[...] = va[:, :output_dim]          # lane-0 aligned slice

    # Mask rows beyond the true batch (zero padding added in the wrapper) so
    # the global advantage mean matches the unpadded computation exactly.
    rows = i * tile_b + jax.lax.broadcasted_iota(jnp.int32, va.shape, 0)
    va_m = jnp.where(rows < batch, va, 0.0)
    # sum_j A_j = sum_j (V + A_j) - A * V  (per masked row), summed over rows.
    tile_sum = (jnp.sum(va_m[:, :output_dim])
                - output_dim * jnp.sum(va_m[:, output_dim:]))
    asum_ref[...] = tile_sum.reshape(1, 1, 1)


def fc_dueling_q(x, params, *, tile_b_max=4096, use_bf16=True):
    """Forward pass of FCDuelingQ. x: [B, input_dim] f32 -> [B, output_dim] f32."""
    B, input_dim = x.shape
    output_dim = params["wa2"].shape[1]
    n_vh = params["wv1"].shape[1]
    n_ah = params["wa1"].shape[1]

    # ---- wrapper-side weight fusion (layout plumbing only) ----
    w_h = jnp.concatenate([params["wv1"], params["wa1"]], axis=1)    # [H, vh+ah]
    b_h = jnp.concatenate([params["bv1"], params["ba1"]], axis=1)    # [1, vh+ah]

    # Output layer: columns [0, A) carry V + A_j (value head folded in);
    # column A is the pure value head (needed to recover sum(A) cheaply).
    w_o = jnp.zeros((n_vh + n_ah, output_dim + 1), jnp.float32)
    w_o = w_o.at[:n_vh, :output_dim].set(
        jnp.broadcast_to(params["wv2"], (n_vh, output_dim)))
    w_o = w_o.at[n_vh:, :output_dim].set(params["wa2"])
    w_o = w_o.at[:n_vh, output_dim:].set(params["wv2"])
    b_o = jnp.zeros((1, output_dim + 1), jnp.float32)
    b_o = b_o.at[:, :output_dim].set(params["ba2"] + params["bv2"])
    b_o = b_o.at[:, output_dim:].set(params["bv2"])

    mat_dtype = jnp.bfloat16 if use_bf16 else jnp.float32
    w1 = params["w1"].astype(mat_dtype)
    w2 = params["w2"].astype(mat_dtype)
    w_h = w_h.astype(mat_dtype)
    w_o = w_o.astype(mat_dtype)

    # ---- balanced batch tiling (padding waste < one 8-row group) ----
    b8 = _round_up(B, 8)
    n_tiles = pl.cdiv(b8, tile_b_max)
    tile_b = _round_up(pl.cdiv(b8, n_tiles), 8)
    b_pad = tile_b * n_tiles
    x_pad = jnp.pad(x, ((0, b_pad - B), (0, 0))) if b_pad != B else x
    x_pad = x_pad.astype(mat_dtype)

    args = (x_pad,
            w1, params["b1"], w2, params["b2"],
            w_h, b_h, w_o, b_o)

    def _resident(arr):  # whole weight/bias stays VMEM-resident across the grid
        return pl.BlockSpec(arr.shape, lambda i: (0, 0))

    kernel = functools.partial(_dueling_fwd_kernel,
                               batch=B, tile_b=tile_b, output_dim=output_dim)

    # Narrow last dims (input_dim, output_dim < 128) are padded to 128 lanes in
    # VMEM; raise the scoped limit accordingly (safe on v5e/v6e/v7x).
    vmem_limit = min(48 * 1024 * 1024,
                     max(32 * 1024 * 1024, 14 * tile_b * 128 * 4))

    qa, asum = pl.pallas_call(
        kernel,
        out_shape=(jax.ShapeDtypeStruct((b_pad, output_dim), jnp.float32),
                   jax.ShapeDtypeStruct((n_tiles, 1, 1), jnp.float32)),
        grid=(n_tiles,),
        in_specs=[pl.BlockSpec((tile_b, input_dim), lambda i: (i, 0))]
                 + [_resident(a) for a in args[1:]],
        out_specs=(pl.BlockSpec((tile_b, output_dim), lambda i: (i, 0)),
                   pl.BlockSpec((1, 1, 1), lambda i: (i, 0, 0))),
        compiler_params=pltpu.CompilerParams(
            dimension_semantics=("parallel",),     # per-tile partial sums -> no serial dep
            vmem_limit_bytes=int(vmem_limit)),
    )(*args)

    # Tiny cross-tile reduction + global mean + elementwise subtract in plain
    # JAX (fused by XLA at HBM roofline); this replaced the former second pass.
    a_mean = jnp.sum(asum) / jnp.float32(B * output_dim)
    return qa[:B] - a_mean


def init_params(key, input_dim, output_dim, hidden=32):
    """Deterministic PyTorch-Linear-style init: U(-1/sqrt(fan_in), 1/sqrt(fan_in))."""
    def linear(k, fan_in, fan_out):
        kw, kb = jax.random.split(k)
        bound = 1.0 / jnp.sqrt(jnp.float32(fan_in))
        w = jax.random.uniform(kw, (fan_in, fan_out), jnp.float32, -bound, bound)
        b = jax.random.uniform(kb, (1, fan_out), jnp.float32, -bound, bound)
        return w, b

    keys = jax.random.split(key, 6)
    p = {}
    p["w1"], p["b1"] = linear(keys[0], input_dim, hidden)      # features[0]
    p["w2"], p["b2"] = linear(keys[1], hidden, hidden)         # features[2]
    p["wv1"], p["bv1"] = linear(keys[2], hidden, hidden)       # value_stream[0]
    p["wv2"], p["bv2"] = linear(keys[3], hidden, 1)            # value_stream[-1]
    p["wa1"], p["ba1"] = linear(keys[4], hidden, hidden)       # advantage_stream[0]
    p["wa2"], p["ba2"] = linear(keys[5], hidden, output_dim)   # advantage_stream[-1]
    return p


def fc_dueling_q_ref(x, p):
    """Plain-JAX reference for correctness checking (matches the torch forward)."""
    h = jnp.maximum(x @ p["w1"] + p["b1"], 0.0)
    h = jnp.maximum(h @ p["w2"] + p["b2"], 0.0)
    vh = jnp.maximum(h @ p["wv1"] + p["bv1"], 0.0)
    v = vh @ p["wv2"] + p["bv2"]
    ah = jnp.maximum(h @ p["wa1"] + p["ba1"], 0.0)
    a = ah @ p["wa2"] + p["ba2"]
    return v + (a - jnp.mean(a))               # global mean, as in the module


if __name__ == "__main__":
    key = jax.random.PRNGKey(0)
    k_params, k_x1, k_x2 = jax.random.split(key, 3)

    input_dim, output_dim, hidden = 8, 4, 32
    params = init_params(k_params, input_dim, output_dim, hidden)

    # Small single-tile case, bit-exact f32 path.
    x = jax.random.normal(k_x1, (2, input_dim), dtype=jnp.float32)
    q_ref = fc_dueling_q_ref(x, params)
    q = jax.block_until_ready(fc_dueling_q(x, params, use_bf16=False))
    assert q.shape == (2, output_dim)
    assert jnp.allclose(q, q_ref, atol=5e-5, rtol=5e-5)

    # Default bf16-MXU path (f32 accumulate) on the same input.
    q_bf = jax.block_until_ready(fc_dueling_q(x, params))
    assert jnp.allclose(q_bf, q_ref, atol=2e-2, rtol=2e-2)

    # Multi-tile case with batch padding: exercises balanced tiling, the
    # per-tile partial advantage sums ("parallel" grid) and padded-row masking.
    x2 = jax.random.normal(k_x2, (20, input_dim), dtype=jnp.float32)
    q2_ref = fc_dueling_q_ref(x2, params)
    q2 = jax.block_until_ready(fc_dueling_q(x2, params, tile_b_max=8, use_bf16=False))
    assert q2.shape == (20, output_dim)
    assert jnp.allclose(q2, q2_ref, atol=5e-5, rtol=5e-5)

    q2_bf = jax.block_until_ready(fc_dueling_q(x2, params, tile_b_max=8))
    assert jnp.allclose(q2_bf, q2_ref, atol=2e-2, rtol=2e-2)

    print("KERNEL_OK")
</pallas_src>

<mosaic_0001>
module attributes {stable_mosaic.version = 11 : i64} {
  func.func @_dueling_fwd_kernel(%arg0: i32, %arg1: memref<8x8xf32, #tpu.memory_space<vmem>>, %arg2: memref<8x32xf32, #tpu.memory_space<vmem>>, %arg3: memref<1x32xf32, #tpu.memory_space<vmem>>, %arg4: memref<32x32xf32, #tpu.memory_space<vmem>>, %arg5: memref<1x32xf32, #tpu.memory_space<vmem>>, %arg6: memref<32x64xf32, #tpu.memory_space<vmem>>, %arg7: memref<1x64xf32, #tpu.memory_space<vmem>>, %arg8: memref<64x5xf32, #tpu.memory_space<vmem>>, %arg9: memref<1x5xf32, #tpu.memory_space<vmem>>, %arg10: memref<8x4xf32, #tpu.memory_space<vmem>>, %arg11: memref<1x1x1xf32, #tpu.memory_space<vmem>>) attributes {dimension_semantics = [#tpu.dimension_semantics<parallel>], iteration_bounds = array<i64: 1>, scalar_prefetch = 0 : i64, scratch_operands = 0 : i64, tpu.core_type = #tpu.core_type<tc>, window_params = [{transform_indices = @transform_0, window_bounds = array<i64: 8, 8>}, {pipeline_mode = #tpu.pipeline_mode<synchronous>, transform_indices = @transform_1, window_bounds = array<i64: 8, 32>}, {pipeline_mode = #tpu.pipeline_mode<synchronous>, transform_indices = @transform_2, window_bounds = array<i64: 1, 32>}, {pipeline_mode = #tpu.pipeline_mode<synchronous>, transform_indices = @transform_3, window_bounds = array<i64: 32, 32>}, {pipeline_mode = #tpu.pipeline_mode<synchronous>, transform_indices = @transform_4, window_bounds = array<i64: 1, 32>}, {pipeline_mode = #tpu.pipeline_mode<synchronous>, transform_indices = @transform_5, window_bounds = array<i64: 32, 64>}, {pipeline_mode = #tpu.pipeline_mode<synchronous>, transform_indices = @transform_6, window_bounds = array<i64: 1, 64>}, {pipeline_mode = #tpu.pipeline_mode<synchronous>, transform_indices = @transform_7, window_bounds = array<i64: 64, 5>}, {pipeline_mode = #tpu.pipeline_mode<synchronous>, transform_indices = @transform_8, window_bounds = array<i64: 1, 5>}, {transform_indices = @transform_9, window_bounds = array<i64: 8, 4>}, {transform_indices = @transform_10, window_bounds = array<i64: 1, 1, 1>}]} {
    %c0 = arith.constant 0 : index
    %c0_0 = arith.constant 0 : index
    %0 = vector.load %arg1[%c0, %c0_0] : memref<8x8xf32, #tpu.memory_space<vmem>>, vector<8x8xf32>
    %c0_1 = arith.constant 0 : index
    %c0_2 = arith.constant 0 : index
    %1 = vector.load %arg2[%c0_1, %c0_2] : memref<8x32xf32, #tpu.memory_space<vmem>>, vector<8x32xf32>
    %cst = arith.constant dense<0.000000e+00> : vector<8x32xf32>
    %2 = tpu.matmul %0, %1, %cst {dimension_numbers = #tpu.dot_dimension_numbers<[1], [0], [0], [1], [0, 0, 1, 1], [], []>} : vector<8x8xf32>, vector<8x32xf32>, vector<8x32xf32> -> vector<8x32xf32>
    %c0_3 = arith.constant 0 : index
    %c0_4 = arith.constant 0 : index
    %3 = vector.load %arg3[%c0_3, %c0_4] : memref<1x32xf32, #tpu.memory_space<vmem>>, vector<1x32xf32>
    %4 = vector.broadcast %3 : vector<1x32xf32> to vector<8x32xf32>
    %5 = arith.addf %2, %4 : vector<8x32xf32>
    %cst_5 = arith.constant 0.000000e+00 : f32
    %6 = vector.broadcast %cst_5 : f32 to vector<8x32xf32>
    %7 = arith.maximumf %5, %6 : vector<8x32xf32>
    %c0_6 = arith.constant 0 : index
    %c0_7 = arith.constant 0 : index
    %8 = vector.load %arg4[%c0_6, %c0_7] : memref<32x32xf32, #tpu.memory_space<vmem>>, vector<32x32xf32>
    %cst_8 = arith.constant dense<0.000000e+00> : vector<8x32xf32>
    %9 = tpu.matmul %7, %8, %cst_8 {dimension_numbers = #tpu.dot_dimension_numbers<[1], [0], [0], [1], [0, 0, 1, 1], [], []>} : vector<8x32xf32>, vector<32x32xf32>, vector<8x32xf32> -> vector<8x32xf32>
    %c0_9 = arith.constant 0 : index
    %c0_10 = arith.constant 0 : index
    %10 = vector.load %arg5[%c0_9, %c0_10] : memref<1x32xf32, #tpu.memory_space<vmem>>, vector<1x32xf32>
    %11 = vector.broadcast %10 : vector<1x32xf32> to vector<8x32xf32>
    %12 = arith.addf %9, %11 : vector<8x32xf32>
    %cst_11 = arith.constant 0.000000e+00 : f32
    %13 = vector.broadcast %cst_11 : f32 to vector<8x32xf32>
    %14 = arith.maximumf %12, %13 : vector<8x32xf32>
    %c0_12 = arith.constant 0 : index
    %c0_13 = arith.constant 0 : index
    %15 = vector.load %arg6[%c0_12, %c0_13] : memref<32x64xf32, #tpu.memory_space<vmem>>, vector<32x64xf32>
    %cst_14 = arith.constant dense<0.000000e+00> : vector<8x64xf32>
    %16 = tpu.matmul %14, %15, %cst_14 {dimension_numbers = #tpu.dot_dimension_numbers<[1], [0], [0], [1], [0, 0, 1, 1], [], []>} : vector<8x32xf32>, vector<32x64xf32>, vector<8x64xf32> -> vector<8x64xf32>
    %c0_15 = arith.constant 0 : index
    %c0_16 = arith.constant 0 : index
    %17 = vector.load %arg7[%c0_15, %c0_16] : memref<1x64xf32, #tpu.memory_space<vmem>>, vector<1x64xf32>
    %18 = vector.broadcast %17 : vector<1x64xf32> to vector<8x64xf32>
    %19 = arith.addf %16, %18 : vector<8x64xf32>
    %cst_17 = arith.constant 0.000000e+00 : f32
    %20 = vector.broadcast %cst_17 : f32 to vector<8x64xf32>
    %21 = arith.maximumf %19, %20 : vector<8x64xf32>
    %c0_18 = arith.constant 0 : index
    %c0_19 = arith.constant 0 : index
    %22 = vector.load %arg8[%c0_18, %c0_19] : memref<64x5xf32, #tpu.memory_space<vmem>>, vector<64x5xf32>
    %cst_20 = arith.constant dense<0.000000e+00> : vector<8x5xf32>
    %23 = tpu.matmul %21, %22, %cst_20 {dimension_numbers = #tpu.dot_dimension_numbers<[1], [0], [0], [1], [0, 0, 1, 1], [], []>} : vector<8x64xf32>, vector<64x5xf32>, vector<8x5xf32> -> vector<8x5xf32>
    %c0_21 = arith.constant 0 : index
    %c0_22 = arith.constant 0 : index
    %24 = vector.load %arg9[%c0_21, %c0_22] : memref<1x5xf32, #tpu.memory_space<vmem>>, vector<1x5xf32>
    %25 = vector.broadcast %24 : vector<1x5xf32> to vector<8x5xf32>
    %26 = arith.addf %23, %25 : vector<8x5xf32>
    %27 = vector.extract_strided_slice %26 {offsets = [0, 0], sizes = [8, 4], strides = [1, 1]} : vector<8x5xf32> to vector<8x4xf32>
    %c0_23 = arith.constant 0 : index
    %c0_24 = arith.constant 0 : index
    %28 = vector.load %arg10[%c0_23, %c0_24] : memref<8x4xf32, #tpu.memory_space<vmem>>, vector<8x4xf32>
    tpu.vector_store %arg10[%c0_23, %c0_24], %27 {strides = array<i32>} : memref<8x4xf32, #tpu.memory_space<vmem>>, vector<8x4xf32>,
    %c8_i32 = arith.constant 8 : i32
    %29 = arith.muli %arg0, %c8_i32 : i32
    %30 = tpu.iota {dimensions = array<i32: 0>} : vector<8x5xi32>
    %31 = vector.broadcast %29 : i32 to vector<8x5xi32>
    %32 = arith.addi %31, %30 : vector<8x5xi32>
    %c2_i32 = arith.constant 2 : i32
    %33 = vector.broadcast %c2_i32 : i32 to vector<8x5xi32>
    %34 = arith.cmpi slt, %32, %33 : vector<8x5xi32>
    %cst_25 = arith.constant 0.000000e+00 : f32
    %35 = vector.broadcast %cst_25 : f32 to vector<8x5xf32>
    %36 = arith.select %34, %26, %35 : vector<8x5xi1>, vector<8x5xf32>
    %37 = vector.extract_strided_slice %36 {offsets = [0, 0], sizes = [8, 4], strides = [1, 1]} : vector<8x5xf32> to vector<8x4xf32>
    %38 = vector.shape_cast %37 : vector<8x4xf32> to vector<1x8x4xf32>
    %cst_26 = arith.constant dense<0.000000e+00> : vector<1xf32>
    %39 = vector.multi_reduction <add>, %38, %cst_26 [1, 2] : vector<1x8x4xf32> to vector<1xf32>
    %40 = vector.shape_cast %39 : vector<1xf32> to vector<1x1x1xf32>
    %41 = vector.extract %40[0, 0, 0] : f32 from vector<1x1x1xf32>
    %42 = vector.extract_strided_slice %36 {offsets = [0, 4], sizes = [8, 1], strides = [1, 1]} : vector<8x5xf32> to vector<8x1xf32>
    %43 = vector.shape_cast %42 : vector<8x1xf32> to vector<1x8x1xf32>
    %cst_27 = arith.constant dense<0.000000e+00> : vector<1xf32>
    %44 = vector.multi_reduction <add>, %43, %cst_27 [1, 2] : vector<1x8x1xf32> to vector<1xf32>
    %45 = vector.shape_cast %44 : vector<1xf32> to vector<1x1x1xf32>
    %46 = vector.extract %45[0, 0, 0] : f32 from vector<1x1x1xf32>
    %cst_28 = arith.constant 4.000000e+00 : f32
    %47 = arith.mulf %cst_28, %46 : f32
    %48 = arith.subf %41, %47 : f32
    %49 = vector.broadcast %48 : f32 to vector<1x1x1xf32>
    %c0_29 = arith.constant 0 : index
    %c0_30 = arith.constant 0 : index
    %c0_31 = arith.constant 0 : index
    %50 = vector.load %arg11[%c0_29, %c0_30, %c0_31] : memref<1x1x1xf32, #tpu.memory_space<vmem>>, vector<1x1x1xf32>
    tpu.vector_store %arg11[%c0_29, %c0_30, %c0_31], %49 {strides = array<i32>} : memref<1x1x1xf32, #tpu.memory_space<vmem>>, vector<1x1x1xf32>,
    return
  }
  func.func @transform_0(%arg0: i32) -> (i32, i32) {
    %c0_i32 = arith.constant 0 : i32
    %c0_i32_0 = arith.constant 0 : i32
    return %arg0, %c0_i32 : i32, i32
  }
  func.func @transform_1(%arg0: i32) -> (i32, i32) {
    %c0_i32 = arith.constant 0 : i32
    %c0_i32_0 = arith.constant 0 : i32
    %c0_i32_1 = arith.constant 0 : i32
    return %c0_i32, %c0_i32_0 : i32, i32
  }
  func.func @transform_2(%arg0: i32) -> (i32, i32) {
    %c0_i32 = arith.constant 0 : i32
    %c0_i32_0 = arith.constant 0 : i32
    %c0_i32_1 = arith.constant 0 : i32
    return %c0_i32, %c0_i32_0 : i32, i32
  }
  func.func @transform_3(%arg0: i32) -> (i32, i32) {
    %c0_i32 = arith.constant 0 : i32
    %c0_i32_0 = arith.constant 0 : i32
    %c0_i32_1 = arith.constant 0 : i32
    return %c0_i32, %c0_i32_0 : i32, i32
  }
  func.func @transform_4(%arg0: i32) -> (i32, i32) {
    %c0_i32 = arith.constant 0 : i32
    %c0_i32_0 = arith.constant 0 : i32
    %c0_i32_1 = arith.constant 0 : i32
    return %c0_i32, %c0_i32_0 : i32, i32
  }
  func.func @transform_5(%arg0: i32) -> (i32, i32) {
    %c0_i32 = arith.constant 0 : i32
    %c0_i32_0 = arith.constant 0 : i32
    %c0_i32_1 = arith.constant 0 : i32
    return %c0_i32, %c0_i32_0 : i32, i32
  }
  func.func @transform_6(%arg0: i32) -> (i32, i32) {
    %c0_i32 = arith.constant 0 : i32
    %c0_i32_0 = arith.constant 0 : i32
    %c0_i32_1 = arith.constant 0 : i32
    return %c0_i32, %c0_i32_0 : i32, i32
  }
  func.func @transform_7(%arg0: i32) -> (i32, i32) {
    %c0_i32 = arith.constant 0 : i32
    %c0_i32_0 = arith.constant 0 : i32
    %c0_i32_1 = arith.constant 0 : i32
    return %c0_i32, %c0_i32_0 : i32, i32
  }
  func.func @transform_8(%arg0: i32) -> (i32, i32) {
    %c0_i32 = arith.constant 0 : i32
    %c0_i32_0 = arith.constant 0 : i32
    %c0_i32_1 = arith.constant 0 : i32
    return %c0_i32, %c0_i32_0 : i32, i32
  }
  func.func @transform_9(%arg0: i32) -> (i32, i32) {
    %c0_i32 = arith.constant 0 : i32
    %c0_i32_0 = arith.constant 0 : i32
    return %arg0, %c0_i32 : i32, i32
  }
  func.func @transform_10(%arg0: i32) -> (i32, i32, i32) {
    %c0_i32 = arith.constant 0 : i32
    %c0_i32_0 = arith.constant 0 : i32
    %c0_i32_1 = arith.constant 0 : i32
    return %arg0, %c0_i32, %c0_i32_0 : i32, i32, i32
  }
}

</mosaic_0001>

<llo_original>
// kernel: tpu_custom_call.1
$region0: #{tpu_custom_call.1}
  #allocation0 [shape = 'u32[]', space=smem, size = 0x4, offset = 0x4, fixed_abs, tag = 'smem constant byte address 0x4 - core index']
  #allocation1 [shape = 'u32[144,128]{1,0:T(1,128)}', space=vmem, size = 0x12000, scoped, tag = 'internal scratch']
  %s0 = inlined_call_operand.vmem [shape: f32[8,8], index: 0, kind: input, shape index: {}]
  %s1 = inlined_call_operand.hbm [shape: f32[8,32], index: 1, kind: input, shape index: {}]
  %s2 = inlined_call_operand.vmem [shape: f32[1,32], index: 2, kind: input, shape index: {}]
  %s3 = inlined_call_operand.vmem [shape: f32[32,32], index: 3, kind: input, shape index: {}]
  %s4 = inlined_call_operand.vmem [shape: f32[1,32], index: 4, kind: input, shape index: {}]
  %s5 = inlined_call_operand.vmem [shape: f32[32,64], index: 5, kind: input, shape index: {}]
  %s6 = inlined_call_operand.vmem [shape: f32[1,64], index: 6, kind: input, shape index: {}]
  %s7 = inlined_call_operand.vmem [shape: f32[64,5], index: 7, kind: input, shape index: {}]
  %s8 = inlined_call_operand.vmem [shape: f32[1,5], index: 8, kind: input, shape index: {}]
  %s9 = inlined_call_operand.vmem [shape: f32[8,4], index: 9, kind: output, shape index: {0}]
  %s10 = inlined_call_operand.hbm [shape: f32[1,1,1], index: 10, kind: output, shape index: {1}]
  %11 = xla_tuple %s9, %s10
  %s12 = sld [smem:[#allocation0]]
  $region58: #{tpu_custom_call.1} parent=0
    _
  %s14 = ssub.s32 1, %s12
  %s15 = scalar_select 0, %s14, %s12
  $region1: #{tpu_custom_call.1} parent=0
    #allocation2 [shape = 'u8[4096]{0}', space=vmem, size = 0x1000, scoped, tag = 'input window, operand 1, single buffered']
    #allocation3 [shape = 's32[1]{0}', space=sflag, size = 0x4, scoped, tag = 'scoped memory for tpu_custom_call.1']
    #allocation4 [shape = 's32[1]{0}', space=sflag, size = 0x4, scoped, tag = 'scoped memory for tpu_custom_call.1']
    #allocation5 [shape = 'u8[512]{0}', space=vmem, size = 0x400, scoped, tag = 'output window, operand 1, single buffered']
    %16 = vsyncpa [#allocation3], 0
    %17 = vsyncpa [#allocation4], 0
    // Predicated region
    $region2: #{tpu_custom_call.1} parent=1 // pred_check
      _
    $region3: #{tpu_custom_call.1} parent=1 // pred_check_branch
      %19 = sbr.rel (0) target = $region5
    $region4: #{tpu_custom_call.1} parent=1 // pred_region
      _
    $region5: #{tpu_custom_call.1} parent=1 // pred_fallthru
      _
    // Predicated region
    $region6: #{tpu_custom_call.1} parent=1 // pred_check
      _
    $region7: #{tpu_custom_call.1} parent=1 // pred_check_branch
      %21 = sbr.rel (0) target = $region9
    $region8: #{tpu_custom_call.1} parent=1 // pred_region
      %s23 = ssub.s32 128, 128
      %24 = vsyncadd [#allocation3], %s23
      %s26 = sshll.u32 [#allocation2], 4
      %s27 = int_to_ptr.vmem [resolvable:$true] %s26
      %29 = dma.hbm_to_vmem [thread:$0]  %s1, 128, %s27, [#allocation3]
    $region9: #{tpu_custom_call.1} parent=1 // pred_fallthru
      _
    // Predicated region
    $region10: #{tpu_custom_call.1} parent=1 // pred_check
      _
    $region11: #{tpu_custom_call.1} parent=1 // pred_check_branch
      %31 = sbr.rel (0) target = $region13
    $region12: #{tpu_custom_call.1} parent=1 // pred_region
      _
    $region13: #{tpu_custom_call.1} parent=1 // pred_fallthru
      _
    // Predicated region
    $region14: #{tpu_custom_call.1} parent=1 // pred_check
      _
    $region15: #{tpu_custom_call.1} parent=1 // pred_check_branch
      %33 = sbr.rel (0) target = $region17
    $region16: #{tpu_custom_call.1} parent=1 // pred_region
      _
    $region17: #{tpu_custom_call.1} parent=1 // pred_fallthru
      _
    // Predicated region
    $region18: #{tpu_custom_call.1} parent=1 // pred_check
      _
    $region19: #{tpu_custom_call.1} parent=1 // pred_check_branch
      %35 = sbr.rel (0) target = $region21
    $region20: #{tpu_custom_call.1} parent=1 // pred_region
      _
    $region21: #{tpu_custom_call.1} parent=1 // pred_fallthru
      _
    // Predicated region
    $region22: #{tpu_custom_call.1} parent=1 // pred_check
      _
    $region23: #{tpu_custom_call.1} parent=1 // pred_check_branch
      %37 = sbr.rel (0) target = $region25
    $region24: #{tpu_custom_call.1} parent=1 // pred_region
      _
    $region25: #{tpu_custom_call.1} parent=1 // pred_fallthru
      _
    // Predicated region
    $region26: #{tpu_custom_call.1} parent=1 // pred_check
      _
    $region27: #{tpu_custom_call.1} parent=1 // pred_check_branch
      %39 = sbr.rel (0) target = $region29
    $region28: #{tpu_custom_call.1} parent=1 // pred_region
      _
    $region29: #{tpu_custom_call.1} parent=1 // pred_fallthru
      _
    // Predicated region
    $region30: #{tpu_custom_call.1} parent=1 // pred_check
      _
    $region31: #{tpu_custom_call.1} parent=1 // pred_check_branch
      %41 = sbr.rel (0) target = $region33
    $region32: #{tpu_custom_call.1} parent=1 // pred_region
      _
    $region33: #{tpu_custom_call.1} parent=1 // pred_fallthru
      _
    // Predicated region
    $region34: #{tpu_custom_call.1} parent=1 // pred_check
      _
    $region35: #{tpu_custom_call.1} parent=1 // pred_check_branch
      %43 = sbr.rel (0) target = $region37
    $region36: #{tpu_custom_call.1} parent=1 // pred_region
      _
    $region37: #{tpu_custom_call.1} parent=1 // pred_fallthru
      _
    // Predicated region
    $region38: #{tpu_custom_call.1} parent=1 // pred_check
      _
    $region39: #{tpu_custom_call.1} parent=1 // pred_check_branch
      %45 = sbr.rel (0) target = $region41
    $region40: #{tpu_custom_call.1} parent=1 // pred_region
      %46 = dma.done [#allocation3], 128
    $region41: #{tpu_custom_call.1} parent=1 // pred_fallthru
      _
    %v47 = vld [vmem:[%s0] sm:$0xff]
    %v48 = vld [vmem:[#allocation2] sm:$0xff]
    %v49 = vld [vmem:[%s2] sm:$0x1]
    %v51 = vlaneseq
    %v52 = vshrl.u32 %v51, 7
    %v53 = vsub.s32 0, %v52
    %v54 = vrot.slane %v49, %v53
    %vm56 = vcmask 64512
    %v58 = vsel %vm56, %v47, 0
    %60 = vmatprep.subr.mxu0 0.0
    %61 = vmatpush1.msra.mxu0 %v48
    %62 = vmatprep.subr.mxu0 0.0
    %63 = vmatpush1.msra.mxu0 0.0
    %64 = vmatprep.subr.mxu0 0.0
    %65 = vmatpush1.msra.mxu0 0.0
    %66 = vmatprep.subr.mxu0 0.0
    %67 = vmatpush1.msra.mxu0 0.0
    %68 = vmatprep.subr.mxu0 0.0
    %69 = vmatpush1.msra.mxu0 0.0
    %70 = vmatprep.subr.mxu0 0.0
    %71 = vmatpush1.msra.mxu0 0.0
    %72 = vmatprep.subr.mxu0 0.0
    %73 = vmatpush1.msra.mxu0 0.0
    %74 = vmatprep.subr.mxu0 0.0
    %75 = vmatpush1.msra.mxu0 0.0
    %76 = vmatprep.subr.mxu0 0.0
    %77 = vmatpush1.msra.mxu0 0.0
    %78 = vmatprep.subr.mxu0 0.0
    %79 = vmatpush1.msra.mxu0 0.0
    %80 = vmatprep.subr.mxu0 0.0
    %81 = vmatpush1.msra.mxu0 0.0
    %82 = vmatprep.subr.mxu0 0.0
    %83 = vmatpush1.msra.mxu0 0.0
    %84 = vmatprep.subr.mxu0 0.0
    %85 = vmatpush1.msra.mxu0 0.0
    %86 = vmatprep.subr.mxu0 0.0
    %87 = vmatpush1.msra.mxu0 0.0
    %88 = vmatprep.subr.mxu0 0.0
    %89 = vmatpush1.msra.mxu0 0.0
    %90 = vmatprep.subr.mxu0 0.0
    %91 = vmatpush1.msra.mxu0 0.0
    %92 = vmatprep.subr.mxu0 0.0
    %93 = vmatpush1.msra.mxu0 0.0
    %94 = vmatprep.subr.mxu0 0.0
    %95 = vmatpush1.msra.mxu0 0.0
    %96 = vmatprep.subr.mxu0 0.0
    %97 = vmatpush1.msra.mxu0 0.0
    %98 = vmatprep.subr.mxu0 0.0
    %99 = vmatpush1.msra.mxu0 0.0
    %100 = vmatprep.subr.mxu0 0.0
    %101 = vmatpush1.msra.mxu0 0.0
    %102 = vmatprep.subr.mxu0 0.0
    %103 = vmatpush1.msra.mxu0 0.0
    %104 = vmatprep.subr.mxu0 0.0
    %105 = vmatpush1.msra.mxu0 0.0
    %106 = vmatprep.subr.mxu0 0.0
    %107 = vmatpush1.msra.mxu0 0.0
    %108 = vmatprep.subr.mxu0 0.0
    %109 = vmatpush1.msra.mxu0 0.0
    %110 = vmatprep.subr.mxu0 0.0
    %111 = vmatpush1.msra.mxu0 0.0
    %112 = vmatprep.subr.mxu0 0.0
    %113 = vmatpush1.msra.mxu0 0.0
    %114 = vmatprep.subr.mxu0 0.0
    %115 = vmatpush1.msra.mxu0 0.0
    %116 = vmatprep.subr.mxu0 0.0
    %117 = vmatpush1.msra.mxu0 0.0
    %118 = vmatprep.subr.mxu0 0.0
    %119 = vmatpush1.msra.mxu0 0.0
    %120 = vmatprep.subr.mxu0 0.0
    %121 = vmatpush1.msra.mxu0 0.0
    %122 = vmatprep.subr.mxu0 0.0
    %123 = vmatpush1.msra.mxu0 0.0
    %124 = vmatprep.mubr.f32.mxu0 0.0
    %125 = vmatmul.mubr.f32.gmra.mrb[0].mxu0 %v58
    %v126 = vpop.f32.mrb[0].mxu0
    %v127 = vadd.f32 %v54, %v126
    %v128 = vpop.f32.mrb[0].mxu0
    %129 = vdwg.mxu0
    %v130 = vmax.f32 %v127, 0.0
    %v131 = vld [vmem:[%s3] sm:$0xff]
    %v132 = vld [vmem:[%s3 + $0x8] sm:$0xff]
    %v133 = vld [vmem:[%s3 + $0x10] sm:$0xff]
    %v134 = vld [vmem:[%s3 + $0x18] sm:$0xff]
    %v135 = vld [vmem:[%s4] sm:$0x1]
    %v137 = vlaneseq
    %v138 = vshrl.u32 %v137, 7
    %v139 = vsub.s32 0, %v138
    %v140 = vrot.slane %v135, %v139
    %vm142 = vcmask 261120
    %v144 = vsel %vm142, %v130, 0
    %146 = vmatprep.subr.mxu0 0.0
    %147 = vmatpush1.msra.mxu0 %v131
    %148 = vmatprep.subr.mxu0 0.0
    %149 = vmatpush1.msra.mxu0 %v132
    %150 = vmatprep.subr.mxu0 0.0
    %151 = vmatpush1.msra.mxu0 %v133
    %152 = vmatprep.subr.mxu0 0.0
    %153 = vmatpush1.msra.mxu0 %v134
    %154 = vmatprep.subr.mxu0 0.0
    %155 = vmatpush1.msra.mxu0 0.0
    %156 = vmatprep.subr.mxu0 0.0
    %157 = vmatpush1.msra.mxu0 0.0
    %158 = vmatprep.subr.mxu0 0.0
    %159 = vmatpush1.msra.mxu0 0.0
    %160 = vmatprep.subr.mxu0 0.0
    %161 = vmatpush1.msra.mxu0 0.0
    %162 = vmatprep.subr.mxu0 0.0
    %163 = vmatpush1.msra.mxu0 0.0
    %164 = vmatprep.subr.mxu0 0.0
    %165 = vmatpush1.msra.mxu0 0.0
    %166 = vmatprep.subr.mxu0 0.0
    %167 = vmatpush1.msra.mxu0 0.0
    %168 = vmatprep.subr.mxu0 0.0
    %169 = vmatpush1.msra.mxu0 0.0
    %170 = vmatprep.subr.mxu0 0.0
    %171 = vmatpush1.msra.mxu0 0.0
    %172 = vmatprep.subr.mxu0 0.0
    %173 = vmatpush1.msra.mxu0 0.0
    %174 = vmatprep.subr.mxu0 0.0
    %175 = vmatpush1.msra.mxu0 0.0
    %176 = vmatprep.subr.mxu0 0.0
    %177 = vmatpush1.msra.mxu0 0.0
    %178 = vmatprep.subr.mxu0 0.0
    %179 = vmatpush1.msra.mxu0 0.0
    %180 = vmatprep.subr.mxu0 0.0
    %181 = vmatpush1.msra.mxu0 0.0
    %182 = vmatprep.subr.mxu0 0.0
    %183 = vmatpush1.msra.mxu0 0.0
    %184 = vmatprep.subr.mxu0 0.0
    %185 = vmatpush1.msra.mxu0 0.0
    %186 = vmatprep.subr.mxu0 0.0
    %187 = vmatpush1.msra.mxu0 0.0
    %188 = vmatprep.subr.mxu0 0.0
    %189 = vmatpush1.msra.mxu0 0.0
    %190 = vmatprep.subr.mxu0 0.0
    %191 = vmatpush1.msra.mxu0 0.0
    %192 = vmatprep.subr.mxu0 0.0
    %193 = vmatpush1.msra.mxu0 0.0
    %194 = vmatprep.subr.mxu0 0.0
    %195 = vmatpush1.msra.mxu0 0.0
    %196 = vmatprep.subr.mxu0 0.0
    %197 = vmatpush1.msra.mxu0 0.0
    %198 = vmatprep.subr.mxu0 0.0
    %199 = vmatpush1.msra.mxu0 0.0
    %200 = vmatprep.subr.mxu0 0.0
    %201 = vmatpush1.msra.mxu0 0.0
    %202 = vmatprep.subr.mxu0 0.0
    %203 = vmatpush1.msra.mxu0 0.0
    %204 = vmatprep.subr.mxu0 0.0
    %205 = vmatpush1.msra.mxu0 0.0
    %206 = vmatprep.subr.mxu0 0.0
    %207 = vmatpush1.msra.mxu0 0.0
    %208 = vmatprep.subr.mxu0 0.0
    %209 = vmatpush1.msra.mxu0 0.0
    %210 = vmatprep.mubr.f32.mxu0 0.0
    %211 = vmatmul.mubr.f32.gmra.mrb[0].mxu0 %v144
    %v212 = vpop.f32.mrb[0].mxu0
    %v213 = vadd.f32 %v140, %v212
    %v214 = vpop.f32.mrb[0].mxu0
    %215 = vdwg.mxu0
    %v216 = vmax.f32 %v213, 0.0
    %v217 = vld [vmem:[%s5] sm:$0xff]
    %v218 = vld [vmem:[%s5 + $0x8] sm:$0xff]
    %v219 = vld [vmem:[%s5 + $0x10] sm:$0xff]
    %v220 = vld [vmem:[%s5 + $0x18] sm:$0xff]
    %v221 = vld [vmem:[%s6] sm:$0x1]
    %v223 = vlaneseq
    %v224 = vshrl.u32 %v223, 7
    %v225 = vsub.s32 0, %v224
    %v226 = vrot.slane %v221, %v225
    %v229 = vsel %vm142, %v216, 0
    %231 = vmatprep.subr.mxu0 0.0
    %232 = vmatpush1.msra.mxu0 %v217
    %233 = vmatprep.subr.mxu0 0.0
    %234 = vmatpush1.msra.mxu0 %v218
    %235 = vmatprep.subr.mxu0 0.0
    %236 = vmatpush1.msra.mxu0 %v219
    %237 = vmatprep.subr.mxu0 0.0
    %238 = vmatpush1.msra.mxu0 %v220
    %239 = vmatprep.subr.mxu0 0.0
    %240 = vmatpush1.msra.mxu0 0.0
    %241 = vmatprep.subr.mxu0 0.0
    %242 = vmatpush1.msra.mxu0 0.0
    %243 = vmatprep.subr.mxu0 0.0
    %244 = vmatpush1.msra.mxu0 0.0
    %245 = vmatprep.subr.mxu0 0.0
    %246 = vmatpush1.msra.mxu0 0.0
    %247 = vmatprep.subr.mxu0 0.0
    %248 = vmatpush1.msra.mxu0 0.0
    %249 = vmatprep.subr.mxu0 0.0
    %250 = vmatpush1.msra.mxu0 0.0
    %251 = vmatprep.subr.mxu0 0.0
    %252 = vmatpush1.msra.mxu0 0.0
    %253 = vmatprep.subr.mxu0 0.0
    %254 = vmatpush1.msra.mxu0 0.0
    %255 = vmatprep.subr.mxu0 0.0
    %256 = vmatpush1.msra.mxu0 0.0
    %257 = vmatprep.subr.mxu0 0.0
    %258 = vmatpush1.msra.mxu0 0.0
    %259 = vmatprep.subr.mxu0 0.0
    %260 = vmatpush1.msra.mxu0 0.0
    %261 = vmatprep.subr.mxu0 0.0
    %262 = vmatpush1.msra.mxu0 0.0
    %263 = vmatprep.subr.mxu0 0.0
    %264 = vmatpush1.msra.mxu0 0.0
    %265 = vmatprep.subr.mxu0 0.0
    %266 = vmatpush1.msra.mxu0 0.0
    %267 = vmatprep.subr.mxu0 0.0
    %268 = vmatpush1.msra.mxu0 0.0
    %269 = vmatprep.subr.mxu0 0.0
    %270 = vmatpush1.msra.mxu0 0.0
    %271 = vmatprep.subr.mxu0 0.0
    %272 = vmatpush1.msra.mxu0 0.0
    %273 = vmatprep.subr.mxu0 0.0
    %274 = vmatpush1.msra.mxu0 0.0
    %275 = vmatprep.subr.mxu0 0.0
    %276 = vmatpush1.msra.mxu0 0.0
    %277 = vmatprep.subr.mxu0 0.0
    %278 = vmatpush1.msra.mxu0 0.0
    %279 = vmatprep.subr.mxu0 0.0
    %280 = vmatpush1.msra.mxu0 0.0
    %281 = vmatprep.subr.mxu0 0.0
    %282 = vmatpush1.msra.mxu0 0.0
    %283 = vmatprep.subr.mxu0 0.0
    %284 = vmatpush1.msra.mxu0 0.0
    %285 = vmatprep.subr.mxu0 0.0
    %286 = vmatpush1.msra.mxu0 0.0
    %287 = vmatprep.subr.mxu0 0.0
    %288 = vmatpush1.msra.mxu0 0.0
    %289 = vmatprep.subr.mxu0 0.0
    %290 = vmatpush1.msra.mxu0 0.0
    %291 = vmatprep.subr.mxu0 0.0
    %292 = vmatpush1.msra.mxu0 0.0
    %293 = vmatprep.subr.mxu0 0.0
    %294 = vmatpush1.msra.mxu0 0.0
    %295 = vmatprep.mubr.f32.mxu0 0.0
    %296 = vmatmul.mubr.f32.gmra.mrb[0].mxu0 %v229
    %v297 = vpop.f32.mrb[0].mxu0
    %v298 = vadd.f32 %v226, %v297
    %v299 = vpop.f32.mrb[0].mxu0
    %300 = vdwg.mxu0
    %v301 = vmax.f32 %v298, 0.0
    %v302 = vld [vmem:[%s7] sm:$0xff]
    %v303 = vld [vmem:[%s7 + $0x8] sm:$0xff]
    %v304 = vld [vmem:[%s7 + $0x10] sm:$0xff]
    %v305 = vld [vmem:[%s7 + $0x18] sm:$0xff]
    %v306 = vld [vmem:[%s7 + $0x20] sm:$0xff]
    %v307 = vld [vmem:[%s7 + $0x28] sm:$0xff]
    %v308 = vld [vmem:[%s7 + $0x30] sm:$0xff]
    %v309 = vld [vmem:[%s7 + $0x38] sm:$0xff]
    %v310 = vld [vmem:[%s8] sm:$0x1]
    %v312 = vlaneseq
    %v313 = vshrl.u32 %v312, 7
    %v314 = vsub.s32 0, %v313
    %v315 = vrot.slane %v310, %v314
    %vm317 = vcmask 523264
    %v319 = vsel %vm317, %v301, 0
    %321 = vmatprep.subr.mxu0 0.0
    %322 = vmatpush1.msra.mxu0 %v302
    %323 = vmatprep.subr.mxu0 0.0
    %324 = vmatpush1.msra.mxu0 %v303
    %325 = vmatprep.subr.mxu0 0.0
    %326 = vmatpush1.msra.mxu0 %v304
    %327 = vmatprep.subr.mxu0 0.0
    %328 = vmatpush1.msra.mxu0 %v305
    %329 = vmatprep.subr.mxu0 0.0
    %330 = vmatpush1.msra.mxu0 %v306
    %331 = vmatprep.subr.mxu0 0.0
    %332 = vmatpush1.msra.mxu0 %v307
    %333 = vmatprep.subr.mxu0 0.0
    %334 = vmatpush1.msra.mxu0 %v308
    %335 = vmatprep.subr.mxu0 0.0
    %336 = vmatpush1.msra.mxu0 %v309
    %337 = vmatprep.subr.mxu0 0.0
    %338 = vmatpush1.msra.mxu0 0.0
    %339 = vmatprep.subr.mxu0 0.0
    %340 = vmatpush1.msra.mxu0 0.0
    %341 = vmatprep.subr.mxu0 0.0
    %342 = vmatpush1.msra.mxu0 0.0
    %343 = vmatprep.subr.mxu0 0.0
    %344 = vmatpush1.msra.mxu0 0.0
    %345 = vmatprep.subr.mxu0 0.0
    %346 = vmatpush1.msra.mxu0 0.0
    %347 = vmatprep.subr.mxu0 0.0
    %348 = vmatpush1.msra.mxu0 0.0
    %349 = vmatprep.subr.mxu0 0.0
    %350 = vmatpush1.msra.mxu0 0.0
    %351 = vmatprep.subr.mxu0 0.0
    %352 = vmatpush1.msra.mxu0 0.0
    %353 = vmatprep.subr.mxu0 0.0
    %354 = vmatpush1.msra.mxu0 0.0
    %355 = vmatprep.subr.mxu0 0.0
    %356 = vmatpush1.msra.mxu0 0.0
    %357 = vmatprep.subr.mxu0 0.0
    %358 = vmatpush1.msra.mxu0 0.0
    %359 = vmatprep.subr.mxu0 0.0
    %360 = vmatpush1.msra.mxu0 0.0
    %361 = vmatprep.subr.mxu0 0.0
    %362 = vmatpush1.msra.mxu0 0.0
    %363 = vmatprep.subr.mxu0 0.0
    %364 = vmatpush1.msra.mxu0 0.0
    %365 = vmatprep.subr.mxu0 0.0
    %366 = vmatpush1.msra.mxu0 0.0
    %367 = vmatprep.subr.mxu0 0.0
    %368 = vmatpush1.msra.mxu0 0.0
    %369 = vmatprep.subr.mxu0 0.0
    %370 = vmatpush1.msra.mxu0 0.0
    %371 = vmatprep.subr.mxu0 0.0
    %372 = vmatpush1.msra.mxu0 0.0
    %373 = vmatprep.subr.mxu0 0.0
    %374 = vmatpush1.msra.mxu0 0.0
    %375 = vmatprep.subr.mxu0 0.0
    %376 = vmatpush1.msra.mxu0 0.0
    %377 = vmatprep.subr.mxu0 0.0
    %378 = vmatpush1.msra.mxu0 0.0
    %379 = vmatprep.subr.mxu0 0.0
    %380 = vmatpush1.msra.mxu0 0.0
    %381 = vmatprep.subr.mxu0 0.0
    %382 = vmatpush1.msra.mxu0 0.0
    %383 = vmatprep.subr.mxu0 0.0
    %384 = vmatpush1.msra.mxu0 0.0
    %385 = vmatprep.mubr.f32.mxu0 0.0
    %386 = vmatmul.mubr.f32.gmra.mrb[0].mxu0 %v319
    %v387 = vpop.f32.mrb[0].mxu0
    %v388 = vadd.f32 %v315, %v387
    %v389 = vpop.f32.mrb[0].mxu0
    %390 = vdwg.mxu0
    %vm391 = vcmask 31744
    %392 = vst.msk [vmem:[%s9] sm:$0xff] %vm391, %v388
    %s393 = smul.u32 0, 8
    %v394 = vlaneseq
    %v395 = vshrl.u32 %v394, 7
    %v396 = vstv %s393
    %v397 = vadd.s32 %v396, %v395
    %vm398 = vcmp.lt.s32.totalorder %v397, 2
    %v399 = vsel %vm398, %v388, 0.0
    %v400 = vsel %vm391, %v399, 0.0
    %401 = vadd.xlane.f32.xlu0 %v400
    %v402 = vpop.xlane.xlu0 %401
    %v403 = vrot.slane %v402, 4
    %v404 = vadd.f32 %v402, %v403
    %v405 = vrot.slane %v404, 2
    %v406 = vadd.f32 %v404, %v405
    %v407 = vrot.slane %v406, 1
    %v408 = vadd.f32 %v406, %v407
    %s409 = vtos %v408
    %411 = vrot.lane.b32.xlu0 %v399, 124
    %v412 = vpop.permute.xlu0 %411
    %vm414 = vcmask 7168
    %v415 = vsel %vm414, %v412, 0.0
    %416 = vadd.xlane.f32.xlu0 %v415
    %v417 = vpop.xlane.xlu0 %416
    %v418 = vrot.slane %v417, 4
    %v419 = vadd.f32 %v417, %v418
    %v420 = vrot.slane %v419, 2
    %v421 = vadd.f32 %v419, %v420
    %v422 = vrot.slane %v421, 1
    %v423 = vadd.f32 %v421, %v422
    %s424 = vtos %v423
    %s425 = smul.f32 %s424, 4.0
    %s426 = ssub.f32 %s409, %s425
    %v427 = vstv %s426
    %vm428 = vcmask 0
    %429 = vst.msk [vmem:[#allocation5] sm:$0x1] %vm428, %v427
    // Predicated region
    $region42: #{tpu_custom_call.1} parent=1 // pred_check
      _
    $region43: #{tpu_custom_call.1} parent=1 // pred_check_branch
      %431 = sbr.rel (0) target = $region45
    $region44: #{tpu_custom_call.1} parent=1 // pred_region
      _
    $region45: #{tpu_custom_call.1} parent=1 // pred_fallthru
      _
    // Predicated region
    $region46: #{tpu_custom_call.1} parent=1 // pred_check
      _
    $region47: #{tpu_custom_call.1} parent=1 // pred_check_branch
      %433 = sbr.rel (0) target = $region49
    $region48: #{tpu_custom_call.1} parent=1 // pred_region
      %s435 = ssub.s32 16, 16
      %436 = vsyncadd [#allocation4], %s435
      %s438 = sshll.u32 [#allocation5], 4
      %s439 = int_to_ptr.vmem [resolvable:$true] %s438
      %441 = dma.vmem_to_hbm [thread:$0]  %s439, 16, %s10, [#allocation4]
    $region49: #{tpu_custom_call.1} parent=1 // pred_fallthru
      _
    // Predicated region
    $region50: #{tpu_custom_call.1} parent=1 // pred_check
      _
    $region51: #{tpu_custom_call.1} parent=1 // pred_check_branch
      %443 = sbr.rel (0) target = $region53
    $region52: #{tpu_custom_call.1} parent=1 // pred_region
      _
    $region53: #{tpu_custom_call.1} parent=1 // pred_fallthru
      _
    // Predicated region
    $region54: #{tpu_custom_call.1} parent=1 // pred_check
      _
    $region55: #{tpu_custom_call.1} parent=1 // pred_check_branch
      %445 = sbr.rel (0) target = $region57
    $region56: #{tpu_custom_call.1} parent=1 // pred_region
      %446 = dma.done [#allocation4], 16
    $region57: #{tpu_custom_call.1} parent=1 // pred_fallthru
      _
    %447 = vsyncpa [#allocation3], 1
    %448 = vsyncpa [#allocation4], 1

</llo_original>
